<compile_context>
chip_gen: v7x
topology: tpu7x:2x2x1
jax: 0.10.0
libtpu: 0.0.40
codegen_flags: <defaults>
</compile_context>

<pallas_src>
import functools

import jax
import jax.numpy as jnp
from jax.experimental import pallas as pl
from jax.experimental.pallas import tpu as pltpu


def basic_rnn_kernel(x0_ref, x1_ref, wx_ref, wy_ref, b_ref, out_ref, *,
                     batch, n_neurons):
    wx = wx_ref[...]
    wy = wy_ref[...]

    # Stack the two timestep inputs along sublanes inside the kernel.
    # `batch` is a multiple of 8, so this is pure vreg placement (no XLU).
    x = jnp.concatenate([x0_ref[...], x1_ref[...]], axis=0)  # (2*batch, n_inputs)

    # Hoisted bias broadcast: materialize once, reuse for both steps.
    bb = jnp.broadcast_to(b_ref[...], (batch, n_neurons))

    # Single stacked matmul covers both X0 @ Wx and X1 @ Wx.
    xw = jnp.dot(x, wx,
                 preferred_element_type=jnp.float32,
                 precision=jax.lax.Precision.HIGHEST)  # (2*batch, n_neurons)
    xw0 = xw[:batch, :]   # 8-sublane-aligned split
    xw1 = xw[batch:, :]

    # Y0 = tanh(X0 @ Wx + b)
    y0 = jnp.tanh(xw0 + bb)

    # Y1 = tanh(Y0 @ Wy + X1 @ Wx + b)
    y1 = jnp.tanh(jnp.dot(y0, wy,
                          preferred_element_type=jnp.float32,
                          precision=jax.lax.Precision.HIGHEST) + xw1 + bb)

    # Row-stacked output: Y0 in rows [0:batch], Y1 in rows [batch:2*batch].
    # Both stores land on sublane-tile boundaries (batch % 8 == 0).
    out_ref[:batch, :] = y0.astype(out_ref.dtype)
    out_ref[batch:, :] = y1.astype(out_ref.dtype)


@jax.jit
def basic_rnn(x0, x1, wx, wy, b):
    batch, _ = x0.shape
    n_neurons = wx.shape[1]

    # Pad batch to a multiple of 8 so in-kernel sublane concat/split and the
    # row-stacked output stores stay tile-aligned (no hidden VMEM copies).
    pad = (-batch) % 8
    if pad:
        x0p = jnp.pad(x0, ((0, pad), (0, 0)))
        x1p = jnp.pad(x1, ((0, pad), (0, 0)))
    else:
        x0p, x1p = x0, x1
    pb = batch + pad

    vmem_spec = pl.BlockSpec(memory_space=pltpu.MemorySpace.VMEM)
    out = pl.pallas_call(
        functools.partial(basic_rnn_kernel, batch=pb, n_neurons=n_neurons),
        out_shape=jax.ShapeDtypeStruct((2 * pb, n_neurons), jnp.float32),
        in_specs=[vmem_spec] * 5,
        out_specs=vmem_spec,
    )(x0p, x1p, wx, wy, b)

    # Contiguous row slices back out (drop any batch padding).
    return out[:batch, :], out[pb:pb + batch, :]


if __name__ == "__main__":
    # Small shapes consistent with the module: n_inputs=16, n_neurons=32, batch=8
    batch, n_inputs, n_neurons = 8, 16, 32

    key = jax.random.PRNGKey(0)
    k_x0, k_x1, k_wx, k_wy = jax.random.split(key, 4)

    x0 = jax.random.normal(k_x0, (batch, n_inputs), dtype=jnp.float32)
    x1 = jax.random.normal(k_x1, (batch, n_inputs), dtype=jnp.float32)
    # Deterministic parameter init (module uses torch.randn / torch.zeros).
    wx = jax.random.normal(k_wx, (n_inputs, n_neurons), dtype=jnp.float32)
    wy = jax.random.normal(k_wy, (n_neurons, n_neurons), dtype=jnp.float32)
    b = jnp.zeros((1, n_neurons), dtype=jnp.float32)

    y0, y1 = jax.block_until_ready(basic_rnn(x0, x1, wx, wy, b))

    # Pure-JAX reference check
    y0_ref = jnp.tanh(x0 @ wx + b)
    y1_ref = jnp.tanh(y0_ref @ wy + x1 @ wx + b)
    assert jnp.allclose(y0, y0_ref, atol=1e-5), "Y0 mismatch"
    assert jnp.allclose(y1, y1_ref, atol=1e-5), "Y1 mismatch"

    print("KERNEL_OK")
</pallas_src>

<mosaic_0001>
module attributes {stable_mosaic.version = 11 : i64} {
  func.func @basic_rnn_kernel(%arg0: memref<8x16xf32, #tpu.memory_space<vmem>>, %arg1: memref<8x16xf32, #tpu.memory_space<vmem>>, %arg2: memref<16x32xf32, #tpu.memory_space<vmem>>, %arg3: memref<32x32xf32, #tpu.memory_space<vmem>>, %arg4: memref<1x32xf32, #tpu.memory_space<vmem>>, %arg5: memref<16x32xf32, #tpu.memory_space<vmem>>) attributes {dimension_semantics = [], scalar_prefetch = 0 : i64, scratch_operands = 0 : i64, tpu.core_type = #tpu.core_type<tc>} {
    %c0 = arith.constant 0 : index
    %c0_0 = arith.constant 0 : index
    %0 = vector.load %arg2[%c0, %c0_0] : memref<16x32xf32, #tpu.memory_space<vmem>>, vector<16x32xf32>
    %c0_1 = arith.constant 0 : index
    %c0_2 = arith.constant 0 : index
    %1 = vector.load %arg3[%c0_1, %c0_2] : memref<32x32xf32, #tpu.memory_space<vmem>>, vector<32x32xf32>
    %c0_3 = arith.constant 0 : index
    %c0_4 = arith.constant 0 : index
    %2 = vector.load %arg0[%c0_3, %c0_4] : memref<8x16xf32, #tpu.memory_space<vmem>>, vector<8x16xf32>
    %c0_5 = arith.constant 0 : index
    %c0_6 = arith.constant 0 : index
    %3 = vector.load %arg1[%c0_5, %c0_6] : memref<8x16xf32, #tpu.memory_space<vmem>>, vector<8x16xf32>
    %4 = tpu.concatenate %2, %3 in 0 : vector<8x16xf32>, vector<8x16xf32> -> vector<16x16xf32>
    %c0_7 = arith.constant 0 : index
    %c0_8 = arith.constant 0 : index
    %5 = vector.load %arg4[%c0_7, %c0_8] : memref<1x32xf32, #tpu.memory_space<vmem>>, vector<1x32xf32>
    %6 = vector.shape_cast %5 : vector<1x32xf32> to vector<1x32xf32>
    %7 = vector.broadcast %6 : vector<1x32xf32> to vector<8x32xf32>
    %cst = arith.constant dense<0.000000e+00> : vector<16x32xf32>
    %8 = tpu.matmul %4, %0, %cst {dimension_numbers = #tpu.dot_dimension_numbers<[1], [0], [0], [1], [0, 0, 1, 1], [], []>, precision = #tpu.contract_precision<fp32>} : vector<16x16xf32>, vector<16x32xf32>, vector<16x32xf32> -> vector<16x32xf32>
    %9 = vector.extract_strided_slice %8 {offsets = [0, 0], sizes = [8, 32], strides = [1, 1]} : vector<16x32xf32> to vector<8x32xf32>
    %10 = vector.extract_strided_slice %8 {offsets = [8, 0], sizes = [8, 32], strides = [1, 1]} : vector<16x32xf32> to vector<8x32xf32>
    %11 = arith.addf %9, %7 : vector<8x32xf32>
    %12 = math.tanh %11 : vector<8x32xf32>
    %cst_9 = arith.constant dense<0.000000e+00> : vector<8x32xf32>
    %13 = tpu.matmul %12, %1, %cst_9 {dimension_numbers = #tpu.dot_dimension_numbers<[1], [0], [0], [1], [0, 0, 1, 1], [], []>, precision = #tpu.contract_precision<fp32>} : vector<8x32xf32>, vector<32x32xf32>, vector<8x32xf32> -> vector<8x32xf32>
    %14 = arith.addf %13, %10 : vector<8x32xf32>
    %15 = arith.addf %14, %7 : vector<8x32xf32>
    %16 = math.tanh %15 : vector<8x32xf32>
    %c0_10 = arith.constant 0 : index
    %c0_11 = arith.constant 0 : index
    %17 = vector.load %arg5[%c0_10, %c0_11] : memref<16x32xf32, #tpu.memory_space<vmem>>, vector<8x32xf32>
    tpu.vector_store %arg5[%c0_10, %c0_11], %12 {strides = array<i32>} : memref<16x32xf32, #tpu.memory_space<vmem>>, vector<8x32xf32>,
    %c8 = arith.constant 8 : index
    %c0_12 = arith.constant 0 : index
    %18 = vector.load %arg5[%c8, %c0_12] : memref<16x32xf32, #tpu.memory_space<vmem>>, vector<8x32xf32>
    tpu.vector_store %arg5[%c8, %c0_12], %16 {strides = array<i32>} : memref<16x32xf32, #tpu.memory_space<vmem>>, vector<8x32xf32>,
    return
  }
}

</mosaic_0001>

<llo_original>
// kernel: basic_rnn.1
$region0: #{basic_rnn.1}
  #allocation0 [shape = 'u32[]', space=smem, size = 0x4, offset = 0x4, fixed_abs, tag = 'smem constant byte address 0x4 - core index']
  #allocation1 [shape = 'u32[144,128]{1,0:T(1,128)}', space=vmem, size = 0x12000, scoped, tag = 'internal scratch']
  %s0 = inlined_call_operand.hbm [shape: f32[8,16], index: 0, kind: input, shape index: {}]
  %s1 = inlined_call_operand.hbm [shape: f32[8,16], index: 1, kind: input, shape index: {}]
  %s2 = inlined_call_operand.hbm [shape: f32[16,32], index: 2, kind: input, shape index: {}]
  %s3 = inlined_call_operand.hbm [shape: f32[32,32], index: 3, kind: input, shape index: {}]
  %s4 = inlined_call_operand.vmem [shape: f32[1,32], index: 4, kind: input, shape index: {}]
  %s5 = inlined_call_operand.vmem [shape: f32[16,32], index: 5, kind: output, shape index: {}]
  %s6 = sld [smem:[#allocation0]]
  $region46: #{basic_rnn.1} parent=0
    _
  %s8 = ssub.s32 1, %s6
  %s9 = scalar_select 0, %s8, %s6
  $region1: #{basic_rnn.1} parent=0
    #allocation2 [shape = 'u8[4096]{0}', space=vmem, size = 0x1000, scoped, tag = 'input window, operand 0, single buffered']
    #allocation3 [shape = 's32[1]{0}', space=sflag, size = 0x4, scoped, tag = 'scoped memory for basic_rnn.1']
    #allocation4 [shape = 'u8[4096]{0}', space=vmem, size = 0x1000, scoped, tag = 'input window, operand 1, single buffered']
    #allocation5 [shape = 's32[1]{0}', space=sflag, size = 0x4, scoped, tag = 'scoped memory for basic_rnn.1']
    #allocation6 [shape = 'u8[8192]{0}', space=vmem, size = 0x2000, scoped, tag = 'input window, operand 2, single buffered']
    #allocation7 [shape = 'u8[16384]{0}', space=vmem, size = 0x4000, scoped, tag = 'input window, operand 3, single buffered']
    #allocation8 [shape = 's32[1]{0}', space=sflag, size = 0x4, scoped, tag = 'scoped memory for basic_rnn.1']
    %10 = vsyncpa [#allocation3], 0
    %11 = vsyncpa [#allocation5], 0
    %12 = vsyncpa [#allocation8], 0
    // Predicated region
    $region2: #{basic_rnn.1} parent=1 // pred_check
      _
    $region3: #{basic_rnn.1} parent=1 // pred_check_branch
      %14 = sbr.rel (0) target = $region5
    $region4: #{basic_rnn.1} parent=1 // pred_region
      %s16 = ssub.s32 128, 128
      %17 = vsyncadd [#allocation3], %s16
      %s19 = sshll.u32 [#allocation2], 4
      %s20 = int_to_ptr.vmem [resolvable:$true] %s19
      %22 = dma.hbm_to_vmem [thread:$0]  %s0, 128, %s20, [#allocation3]
    $region5: #{basic_rnn.1} parent=1 // pred_fallthru
      _
    // Predicated region
    $region6: #{basic_rnn.1} parent=1 // pred_check
      _
    $region7: #{basic_rnn.1} parent=1 // pred_check_branch
      %24 = sbr.rel (0) target = $region9
    $region8: #{basic_rnn.1} parent=1 // pred_region
      %s26 = ssub.s32 128, 128
      %27 = vsyncadd [#allocation5], %s26
      %s29 = sshll.u32 [#allocation4], 4
      %s30 = int_to_ptr.vmem [resolvable:$true] %s29
      %32 = dma.hbm_to_vmem [thread:$0]  %s1, 128, %s30, [#allocation5]
    $region9: #{basic_rnn.1} parent=1 // pred_fallthru
      _
    // Predicated region
    $region10: #{basic_rnn.1} parent=1 // pred_check
      _
    $region11: #{basic_rnn.1} parent=1 // pred_check_branch
      %34 = sbr.rel (0) target = $region13
    $region12: #{basic_rnn.1} parent=1 // pred_region
      %s36 = ssub.s32 256, 256
      %37 = vsyncadd [#allocation5], %s36
      %s38 = sshll.u32 [#allocation6], 4
      %s39 = int_to_ptr.vmem [resolvable:$true] %s38
      %44 = dma.hbm_to_vmem [thread:$0]  %s2, 256, %s39, [#allocation5], 128, 128, 8
    $region13: #{basic_rnn.1} parent=1 // pred_fallthru
      _
    // Predicated region
    $region14: #{basic_rnn.1} parent=1 // pred_check
      _
    $region15: #{basic_rnn.1} parent=1 // pred_check_branch
      %46 = sbr.rel (0) target = $region17
    $region16: #{basic_rnn.1} parent=1 // pred_region
      %s48 = ssub.s32 512, 512
      %49 = vsyncadd [#allocation8], %s48
      %s50 = sshll.u32 [#allocation7], 4
      %s51 = int_to_ptr.vmem [resolvable:$true] %s50
      %56 = dma.hbm_to_vmem [thread:$0]  %s3, 512, %s51, [#allocation8], 128, 128, 8
    $region17: #{basic_rnn.1} parent=1 // pred_fallthru
      _
    // Predicated region
    $region18: #{basic_rnn.1} parent=1 // pred_check
      _
    $region19: #{basic_rnn.1} parent=1 // pred_check_branch
      %58 = sbr.rel (0) target = $region21
    $region20: #{basic_rnn.1} parent=1 // pred_region
      _
    $region21: #{basic_rnn.1} parent=1 // pred_fallthru
      _
    // Predicated region
    $region22: #{basic_rnn.1} parent=1 // pred_check
      _
    $region23: #{basic_rnn.1} parent=1 // pred_check_branch
      %60 = sbr.rel (0) target = $region25
    $region24: #{basic_rnn.1} parent=1 // pred_region
      %61 = dma.done [#allocation3], 128
    $region25: #{basic_rnn.1} parent=1 // pred_fallthru
      _
    // Predicated region
    $region26: #{basic_rnn.1} parent=1 // pred_check
      _
    $region27: #{basic_rnn.1} parent=1 // pred_check_branch
      %63 = sbr.rel (0) target = $region29
    $region28: #{basic_rnn.1} parent=1 // pred_region
      %64 = dma.done [#allocation5], 128
    $region29: #{basic_rnn.1} parent=1 // pred_fallthru
      _
    // Predicated region
    $region30: #{basic_rnn.1} parent=1 // pred_check
      _
    $region31: #{basic_rnn.1} parent=1 // pred_check_branch
      %66 = sbr.rel (0) target = $region33
    $region32: #{basic_rnn.1} parent=1 // pred_region
      %67 = dma.done [#allocation5], 256
    $region33: #{basic_rnn.1} parent=1 // pred_fallthru
      _
    // Predicated region
    $region34: #{basic_rnn.1} parent=1 // pred_check
      _
    $region35: #{basic_rnn.1} parent=1 // pred_check_branch
      %69 = sbr.rel (0) target = $region37
    $region36: #{basic_rnn.1} parent=1 // pred_region
      %70 = dma.done [#allocation8], 512
    $region37: #{basic_rnn.1} parent=1 // pred_fallthru
      _
    %v71 = vld [vmem:[#allocation6] sm:$0xff]
    %v72 = vld [vmem:[#allocation6 + $0x8] sm:$0xff]
    %v73 = vld [vmem:[#allocation7] sm:$0xff]
    %v74 = vld [vmem:[#allocation7 + $0x8] sm:$0xff]
    %v75 = vld [vmem:[#allocation7 + $0x10] sm:$0xff]
    %v76 = vld [vmem:[#allocation7 + $0x18] sm:$0xff]
    %v77 = vld [vmem:[#allocation2] sm:$0xff]
    %v78 = vld [vmem:[#allocation4] sm:$0xff]
    %v79 = vld [vmem:[%s4] sm:$0x1]
    %v81 = vlaneseq
    %v82 = vshrl.u32 %v81, 7
    %v83 = vsub.s32 0, %v82
    %v84 = vrot.slane %v79, %v83
    %vm86 = vcmask 130048
    %v88 = vsel %vm86, %v77, 0
    %v91 = vsel %vm86, %v78, 0
    %93 = vmatprep.subr.mxu0 0.0
    %v94 = vand.u32 %v71, 4294901760
    %95 = vmatpush1.msra.mxu0 %v94
    %96 = vmatprep.subr.mxu0 0.0
    %v97 = vand.u32 %v72, 4294901760
    %98 = vmatpush1.msra.mxu0 %v97
    %99 = vmatprep.subr.mxu0 0.0
    %100 = vmatpush1.msra.mxu0 0.0
    %101 = vmatprep.subr.mxu0 0.0
    %102 = vmatpush1.msra.mxu0 0.0
    %103 = vmatprep.subr.mxu0 0.0
    %104 = vmatpush1.msra.mxu0 0.0
    %105 = vmatprep.subr.mxu0 0.0
    %106 = vmatpush1.msra.mxu0 0.0
    %107 = vmatprep.subr.mxu0 0.0
    %108 = vmatpush1.msra.mxu0 0.0
    %109 = vmatprep.subr.mxu0 0.0
    %110 = vmatpush1.msra.mxu0 0.0
    %111 = vmatprep.subr.mxu0 0.0
    %112 = vmatpush1.msra.mxu0 0.0
    %113 = vmatprep.subr.mxu0 0.0
    %114 = vmatpush1.msra.mxu0 0.0
    %115 = vmatprep.subr.mxu0 0.0
    %116 = vmatpush1.msra.mxu0 0.0
    %117 = vmatprep.subr.mxu0 0.0
    %118 = vmatpush1.msra.mxu0 0.0
    %119 = vmatprep.subr.mxu0 0.0
    %120 = vmatpush1.msra.mxu0 0.0
    %121 = vmatprep.subr.mxu0 0.0
    %122 = vmatpush1.msra.mxu0 0.0
    %123 = vmatprep.subr.mxu0 0.0
    %124 = vmatpush1.msra.mxu0 0.0
    %125 = vmatprep.subr.mxu0 0.0
    %126 = vmatpush1.msra.mxu0 0.0
    %127 = vmatprep.subr.mxu0 0.0
    %128 = vmatpush1.msra.mxu0 0.0
    %129 = vmatprep.subr.mxu0 0.0
    %130 = vmatpush1.msra.mxu0 0.0
    %131 = vmatprep.subr.mxu0 0.0
    %132 = vmatpush1.msra.mxu0 0.0
    %133 = vmatprep.subr.mxu0 0.0
    %134 = vmatpush1.msra.mxu0 0.0
    %135 = vmatprep.subr.mxu0 0.0
    %136 = vmatpush1.msra.mxu0 0.0
    %137 = vmatprep.subr.mxu0 0.0
    %138 = vmatpush1.msra.mxu0 0.0
    %139 = vmatprep.subr.mxu0 0.0
    %140 = vmatpush1.msra.mxu0 0.0
    %141 = vmatprep.subr.mxu0 0.0
    %142 = vmatpush1.msra.mxu0 0.0
    %143 = vmatprep.subr.mxu0 0.0
    %144 = vmatpush1.msra.mxu0 0.0
    %145 = vmatprep.subr.mxu0 0.0
    %146 = vmatpush1.msra.mxu0 0.0
    %147 = vmatprep.subr.mxu0 0.0
    %148 = vmatpush1.msra.mxu0 0.0
    %149 = vmatprep.subr.mxu0 0.0
    %150 = vmatpush1.msra.mxu0 0.0
    %151 = vmatprep.subr.mxu0 0.0
    %152 = vmatpush1.msra.mxu0 0.0
    %153 = vmatprep.subr.mxu0 0.0
    %154 = vmatpush1.msra.mxu0 0.0
    %155 = vmatprep.subr.mxu0 0.0
    %156 = vmatpush1.msra.mxu0 0.0
    %157 = vmatprep.subr.mxu0 0.0
    %158 = vmatpush1.msra.mxu0 0.0
    %159 = vmatprep.mubr.f32.mxu0 0.0
    %v160 = vand.u32 %v88, 4294901760
    %v161 = vsub.f32 %v88, %v160
    %v162 = vand.u32 %v161, 4294901760
    %v163 = vsub.f32 %v161, %v162
    %v164 = vand.u32 %v163, 4294901760
    %165 = vmatmul.mubr.f32.gmra.mrb[0].mxu0 %v164
    %v166 = vpop.f32.mrb[0].mxu0
    %v167 = vadd.f32 0.0, %v166
    %v168 = vpop.f32.mrb[0].mxu0
    %169 = vmatprep.mubr.f32.mxu0 0.0
    %v170 = vand.u32 %v91, 4294901760
    %v171 = vsub.f32 %v91, %v170
    %v172 = vand.u32 %v171, 4294901760
    %v173 = vsub.f32 %v171, %v172
    %v174 = vand.u32 %v173, 4294901760
    %175 = vmatmul.mubr.f32.gmra.mrb[0].mxu0 %v174
    %v176 = vpop.f32.mrb[0].mxu0
    %v177 = vadd.f32 0.0, %v176
    %v178 = vpop.f32.mrb[0].mxu0
    %179 = vdwg.mxu0
    %180 = vmatprep.subr.mxu0 0.0
    %v181 = vand.u32 %v71, 4294901760
    %v182 = vsub.f32 %v71, %v181
    %v183 = vand.u32 %v182, 4294901760
    %v184 = vsub.f32 %v182, %v183
    %v185 = vand.u32 %v184, 4294901760
    %186 = vmatpush1.msra.mxu0 %v185
    %187 = vmatprep.subr.mxu0 0.0
    %v188 = vand.u32 %v72, 4294901760
    %v189 = vsub.f32 %v72, %v188
    %v190 = vand.u32 %v189, 4294901760
    %v191 = vsub.f32 %v189, %v190
    %v192 = vand.u32 %v191, 4294901760
    %193 = vmatpush1.msra.mxu0 %v192
    %194 = vmatprep.subr.mxu0 0.0
    %195 = vmatpush1.msra.mxu0 0.0
    %196 = vmatprep.subr.mxu0 0.0
    %197 = vmatpush1.msra.mxu0 0.0
    %198 = vmatprep.subr.mxu0 0.0
    %199 = vmatpush1.msra.mxu0 0.0
    %200 = vmatprep.subr.mxu0 0.0
    %201 = vmatpush1.msra.mxu0 0.0
    %202 = vmatprep.subr.mxu0 0.0
    %203 = vmatpush1.msra.mxu0 0.0
    %204 = vmatprep.subr.mxu0 0.0
    %205 = vmatpush1.msra.mxu0 0.0
    %206 = vmatprep.subr.mxu0 0.0
    %207 = vmatpush1.msra.mxu0 0.0
    %208 = vmatprep.subr.mxu0 0.0
    %209 = vmatpush1.msra.mxu0 0.0
    %210 = vmatprep.subr.mxu0 0.0
    %211 = vmatpush1.msra.mxu0 0.0
    %212 = vmatprep.subr.mxu0 0.0
    %213 = vmatpush1.msra.mxu0 0.0
    %214 = vmatprep.subr.mxu0 0.0
    %215 = vmatpush1.msra.mxu0 0.0
    %216 = vmatprep.subr.mxu0 0.0
    %217 = vmatpush1.msra.mxu0 0.0
    %218 = vmatprep.subr.mxu0 0.0
    %219 = vmatpush1.msra.mxu0 0.0
    %220 = vmatprep.subr.mxu0 0.0
    %221 = vmatpush1.msra.mxu0 0.0
    %222 = vmatprep.subr.mxu0 0.0
    %223 = vmatpush1.msra.mxu0 0.0
    %224 = vmatprep.subr.mxu0 0.0
    %225 = vmatpush1.msra.mxu0 0.0
    %226 = vmatprep.subr.mxu0 0.0
    %227 = vmatpush1.msra.mxu0 0.0
    %228 = vmatprep.subr.mxu0 0.0
    %229 = vmatpush1.msra.mxu0 0.0
    %230 = vmatprep.subr.mxu0 0.0
    %231 = vmatpush1.msra.mxu0 0.0
    %232 = vmatprep.subr.mxu0 0.0
    %233 = vmatpush1.msra.mxu0 0.0
    %234 = vmatprep.subr.mxu0 0.0
    %235 = vmatpush1.msra.mxu0 0.0
    %236 = vmatprep.subr.mxu0 0.0
    %237 = vmatpush1.msra.mxu0 0.0
    %238 = vmatprep.subr.mxu0 0.0
    %239 = vmatpush1.msra.mxu0 0.0
    %240 = vmatprep.subr.mxu0 0.0
    %241 = vmatpush1.msra.mxu0 0.0
    %242 = vmatprep.subr.mxu0 0.0
    %243 = vmatpush1.msra.mxu0 0.0
    %244 = vmatprep.subr.mxu0 0.0
    %245 = vmatpush1.msra.mxu0 0.0
    %246 = vmatprep.subr.mxu0 0.0
    %247 = vmatpush1.msra.mxu0 0.0
    %248 = vmatprep.subr.mxu0 0.0
    %249 = vmatpush1.msra.mxu0 0.0
    %250 = vmatprep.subr.mxu0 0.0
    %251 = vmatpush1.msra.mxu0 0.0
    %252 = vmatprep.subr.mxu0 0.0
    %253 = vmatpush1.msra.mxu0 0.0
    %254 = vmatprep.mubr.f32.mxu0 0.0
    %v255 = vand.u32 %v88, 4294901760
    %256 = vmatmul.mubr.f32.gmra.mrb[0].mxu0 %v255
    %v257 = vpop.f32.mrb[0].mxu0
    %v258 = vadd.f32 %v167, %v257
    %v259 = vpop.f32.mrb[0].mxu0
    %260 = vmatprep.mubr.f32.mxu0 0.0
    %v261 = vand.u32 %v91, 4294901760
    %262 = vmatmul.mubr.f32.gmra.mrb[0].mxu0 %v261
    %v263 = vpop.f32.mrb[0].mxu0
    %v264 = vadd.f32 %v177, %v263
    %v265 = vpop.f32.mrb[0].mxu0
    %266 = vdwg.mxu0
    %267 = vmatprep.subr.mxu0 0.0
    %v268 = vand.u32 %v71, 4294901760
    %v269 = vsub.f32 %v71, %v268
    %270 = vmatpush1.msra.mxu0 %v269
    %271 = vmatprep.subr.mxu0 0.0
    %v272 = vand.u32 %v72, 4294901760
    %v273 = vsub.f32 %v72, %v272
    %274 = vmatpush1.msra.mxu0 %v273
    %275 = vmatprep.subr.mxu0 0.0
    %276 = vmatpush1.msra.mxu0 0.0
    %277 = vmatprep.subr.mxu0 0.0
    %278 = vmatpush1.msra.mxu0 0.0
    %279 = vmatprep.subr.mxu0 0.0
    %280 = vmatpush1.msra.mxu0 0.0
    %281 = vmatprep.subr.mxu0 0.0
    %282 = vmatpush1.msra.mxu0 0.0
    %283 = vmatprep.subr.mxu0 0.0
    %284 = vmatpush1.msra.mxu0 0.0
    %285 = vmatprep.subr.mxu0 0.0
    %286 = vmatpush1.msra.mxu0 0.0
    %287 = vmatprep.subr.mxu0 0.0
    %288 = vmatpush1.msra.mxu0 0.0
    %289 = vmatprep.subr.mxu0 0.0
    %290 = vmatpush1.msra.mxu0 0.0
    %291 = vmatprep.subr.mxu0 0.0
    %292 = vmatpush1.msra.mxu0 0.0
    %293 = vmatprep.subr.mxu0 0.0
    %294 = vmatpush1.msra.mxu0 0.0
    %295 = vmatprep.subr.mxu0 0.0
    %296 = vmatpush1.msra.mxu0 0.0
    %297 = vmatprep.subr.mxu0 0.0
    %298 = vmatpush1.msra.mxu0 0.0
    %299 = vmatprep.subr.mxu0 0.0
    %300 = vmatpush1.msra.mxu0 0.0
    %301 = vmatprep.subr.mxu0 0.0
    %302 = vmatpush1.msra.mxu0 0.0
    %303 = vmatprep.subr.mxu0 0.0
    %304 = vmatpush1.msra.mxu0 0.0
    %305 = vmatprep.subr.mxu0 0.0
    %306 = vmatpush1.msra.mxu0 0.0
    %307 = vmatprep.subr.mxu0 0.0
    %308 = vmatpush1.msra.mxu0 0.0
    %309 = vmatprep.subr.mxu0 0.0
    %310 = vmatpush1.msra.mxu0 0.0
    %311 = vmatprep.subr.mxu0 0.0
    %312 = vmatpush1.msra.mxu0 0.0
    %313 = vmatprep.subr.mxu0 0.0
    %314 = vmatpush1.msra.mxu0 0.0
    %315 = vmatprep.subr.mxu0 0.0
    %316 = vmatpush1.msra.mxu0 0.0
    %317 = vmatprep.subr.mxu0 0.0
    %318 = vmatpush1.msra.mxu0 0.0
    %319 = vmatprep.subr.mxu0 0.0
    %320 = vmatpush1.msra.mxu0 0.0
    %321 = vmatprep.subr.mxu0 0.0
    %322 = vmatpush1.msra.mxu0 0.0
    %323 = vmatprep.subr.mxu0 0.0
    %324 = vmatpush1.msra.mxu0 0.0
    %325 = vmatprep.subr.mxu0 0.0
    %326 = vmatpush1.msra.mxu0 0.0
    %327 = vmatprep.subr.mxu0 0.0
    %328 = vmatpush1.msra.mxu0 0.0
    %329 = vmatprep.subr.mxu0 0.0
    %330 = vmatpush1.msra.mxu0 0.0
    %331 = vmatprep.subr.mxu0 0.0
    %332 = vmatpush1.msra.mxu0 0.0
    %333 = vmatprep.subr.mxu0 0.0
    %334 = vmatpush1.msra.mxu0 0.0
    %335 = vmatprep.mubr.f32.mxu0 0.0
    %v336 = vand.u32 %v88, 4294901760
    %v337 = vsub.f32 %v88, %v336
    %338 = vmatmul.mubr.f32.gmra.mrb[0].mxu0 %v337
    %v339 = vpop.f32.mrb[0].mxu0
    %v340 = vadd.f32 %v258, %v339
    %v341 = vpop.f32.mrb[0].mxu0
    %342 = vmatprep.mubr.f32.mxu0 0.0
    %v343 = vand.u32 %v91, 4294901760
    %v344 = vsub.f32 %v91, %v343
    %345 = vmatmul.mubr.f32.gmra.mrb[0].mxu0 %v344
    %v346 = vpop.f32.mrb[0].mxu0
    %v347 = vadd.f32 %v264, %v346
    %v348 = vpop.f32.mrb[0].mxu0
    %349 = vdwg.mxu0
    %350 = vmatprep.subr.mxu0 0.0
    %v351 = vand.u32 %v71, 4294901760
    %352 = vmatpush1.msra.mxu0 %v351
    %353 = vmatprep.subr.mxu0 0.0
    %v354 = vand.u32 %v72, 4294901760
    %355 = vmatpush1.msra.mxu0 %v354
    %356 = vmatprep.subr.mxu0 0.0
    %357 = vmatpush1.msra.mxu0 0.0
    %358 = vmatprep.subr.mxu0 0.0
    %359 = vmatpush1.msra.mxu0 0.0
    %360 = vmatprep.subr.mxu0 0.0
    %361 = vmatpush1.msra.mxu0 0.0
    %362 = vmatprep.subr.mxu0 0.0
    %363 = vmatpush1.msra.mxu0 0.0
    %364 = vmatprep.subr.mxu0 0.0
    %365 = vmatpush1.msra.mxu0 0.0
    %366 = vmatprep.subr.mxu0 0.0
    %367 = vmatpush1.msra.mxu0 0.0
    %368 = vmatprep.subr.mxu0 0.0
    %369 = vmatpush1.msra.mxu0 0.0
    %370 = vmatprep.subr.mxu0 0.0
    %371 = vmatpush1.msra.mxu0 0.0
    %372 = vmatprep.subr.mxu0 0.0
    %373 = vmatpush1.msra.mxu0 0.0
    %374 = vmatprep.subr.mxu0 0.0
    %375 = vmatpush1.msra.mxu0 0.0
    %376 = vmatprep.subr.mxu0 0.0
    %377 = vmatpush1.msra.mxu0 0.0
    %378 = vmatprep.subr.mxu0 0.0
    %379 = vmatpush1.msra.mxu0 0.0
    %380 = vmatprep.subr.mxu0 0.0
    %381 = vmatpush1.msra.mxu0 0.0
    %382 = vmatprep.subr.mxu0 0.0
    %383 = vmatpush1.msra.mxu0 0.0
    %384 = vmatprep.subr.mxu0 0.0
    %385 = vmatpush1.msra.mxu0 0.0
    %386 = vmatprep.subr.mxu0 0.0
    %387 = vmatpush1.msra.mxu0 0.0
    %388 = vmatprep.subr.mxu0 0.0
    %389 = vmatpush1.msra.mxu0 0.0
    %390 = vmatprep.subr.mxu0 0.0
    %391 = vmatpush1.msra.mxu0 0.0
    %392 = vmatprep.subr.mxu0 0.0
    %393 = vmatpush1.msra.mxu0 0.0
    %394 = vmatprep.subr.mxu0 0.0
    %395 = vmatpush1.msra.mxu0 0.0
    %396 = vmatprep.subr.mxu0 0.0
    %397 = vmatpush1.msra.mxu0 0.0
    %398 = vmatprep.subr.mxu0 0.0
    %399 = vmatpush1.msra.mxu0 0.0
    %400 = vmatprep.subr.mxu0 0.0
    %401 = vmatpush1.msra.mxu0 0.0
    %402 = vmatprep.subr.mxu0 0.0
    %403 = vmatpush1.msra.mxu0 0.0
    %404 = vmatprep.subr.mxu0 0.0
    %405 = vmatpush1.msra.mxu0 0.0
    %406 = vmatprep.subr.mxu0 0.0
    %407 = vmatpush1.msra.mxu0 0.0
    %408 = vmatprep.subr.mxu0 0.0
    %409 = vmatpush1.msra.mxu0 0.0
    %410 = vmatprep.subr.mxu0 0.0
    %411 = vmatpush1.msra.mxu0 0.0
    %412 = vmatprep.subr.mxu0 0.0
    %413 = vmatpush1.msra.mxu0 0.0
    %414 = vmatprep.subr.mxu0 0.0
    %415 = vmatpush1.msra.mxu0 0.0
    %416 = vmatprep.mubr.f32.mxu0 0.0
    %v417 = vand.u32 %v88, 4294901760
    %v418 = vsub.f32 %v88, %v417
    %v419 = vand.u32 %v418, 4294901760
    %420 = vmatmul.mubr.f32.gmra.mrb[0].mxu0 %v419
    %v421 = vpop.f32.mrb[0].mxu0
    %v422 = vadd.f32 %v340, %v421
    %v423 = vpop.f32.mrb[0].mxu0
    %424 = vmatprep.mubr.f32.mxu0 0.0
    %v425 = vand.u32 %v91, 4294901760
    %v426 = vsub.f32 %v91, %v425
    %v427 = vand.u32 %v426, 4294901760
    %428 = vmatmul.mubr.f32.gmra.mrb[0].mxu0 %v427
    %v429 = vpop.f32.mrb[0].mxu0
    %v430 = vadd.f32 %v347, %v429
    %v431 = vpop.f32.mrb[0].mxu0
    %432 = vdwg.mxu0
    %433 = vmatprep.subr.mxu0 0.0
    %v434 = vand.u32 %v71, 4294901760
    %v435 = vsub.f32 %v71, %v434
    %v436 = vand.u32 %v435, 4294901760
    %437 = vmatpush1.msra.mxu0 %v436
    %438 = vmatprep.subr.mxu0 0.0
    %v439 = vand.u32 %v72, 4294901760
    %v440 = vsub.f32 %v72, %v439
    %v441 = vand.u32 %v440, 4294901760
    %442 = vmatpush1.msra.mxu0 %v441
    %443 = vmatprep.subr.mxu0 0.0
    %444 = vmatpush1.msra.mxu0 0.0
    %445 = vmatprep.subr.mxu0 0.0
    %446 = vmatpush1.msra.mxu0 0.0
    %447 = vmatprep.subr.mxu0 0.0
    %448 = vmatpush1.msra.mxu0 0.0
    %449 = vmatprep.subr.mxu0 0.0
    %450 = vmatpush1.msra.mxu0 0.0
    %451 = vmatprep.subr.mxu0 0.0
    %452 = vmatpush1.msra.mxu0 0.0
    %453 = vmatprep.subr.mxu0 0.0
    %454 = vmatpush1.msra.mxu0 0.0
    %455 = vmatprep.subr.mxu0 0.0
    %456 = vmatpush1.msra.mxu0 0.0
    %457 = vmatprep.subr.mxu0 0.0
    %458 = vmatpush1.msra.mxu0 0.0
    %459 = vmatprep.subr.mxu0 0.0
    %460 = vmatpush1.msra.mxu0 0.0
    %461 = vmatprep.subr.mxu0 0.0
    %462 = vmatpush1.msra.mxu0 0.0
    %463 = vmatprep.subr.mxu0 0.0
    %464 = vmatpush1.msra.mxu0 0.0
    %465 = vmatprep.subr.mxu0 0.0
    %466 = vmatpush1.msra.mxu0 0.0
    %467 = vmatprep.subr.mxu0 0.0
    %468 = vmatpush1.msra.mxu0 0.0
    %469 = vmatprep.subr.mxu0 0.0
    %470 = vmatpush1.msra.mxu0 0.0
    %471 = vmatprep.subr.mxu0 0.0
    %472 = vmatpush1.msra.mxu0 0.0
    %473 = vmatprep.subr.mxu0 0.0
    %474 = vmatpush1.msra.mxu0 0.0
    %475 = vmatprep.subr.mxu0 0.0
    %476 = vmatpush1.msra.mxu0 0.0
    %477 = vmatprep.subr.mxu0 0.0
    %478 = vmatpush1.msra.mxu0 0.0
    %479 = vmatprep.subr.mxu0 0.0
    %480 = vmatpush1.msra.mxu0 0.0
    %481 = vmatprep.subr.mxu0 0.0
    %482 = vmatpush1.msra.mxu0 0.0
    %483 = vmatprep.subr.mxu0 0.0
    %484 = vmatpush1.msra.mxu0 0.0
    %485 = vmatprep.subr.mxu0 0.0
    %486 = vmatpush1.msra.mxu0 0.0
    %487 = vmatprep.subr.mxu0 0.0
    %488 = vmatpush1.msra.mxu0 0.0
    %489 = vmatprep.subr.mxu0 0.0
    %490 = vmatpush1.msra.mxu0 0.0
    %491 = vmatprep.subr.mxu0 0.0
    %492 = vmatpush1.msra.mxu0 0.0
    %493 = vmatprep.subr.mxu0 0.0
    %494 = vmatpush1.msra.mxu0 0.0
    %495 = vmatprep.subr.mxu0 0.0
    %496 = vmatpush1.msra.mxu0 0.0
    %497 = vmatprep.subr.mxu0 0.0
    %498 = vmatpush1.msra.mxu0 0.0
    %499 = vmatprep.subr.mxu0 0.0
    %500 = vmatpush1.msra.mxu0 0.0
    %501 = vmatprep.subr.mxu0 0.0
    %502 = vmatpush1.msra.mxu0 0.0
    %503 = vmatprep.mubr.f32.mxu0 0.0
    %v504 = vand.u32 %v88, 4294901760
    %505 = vmatmul.mubr.f32.gmra.mrb[0].mxu0 %v504
    %v506 = vpop.f32.mrb[0].mxu0
    %v507 = vadd.f32 %v422, %v506
    %v508 = vpop.f32.mrb[0].mxu0
    %509 = vmatprep.mubr.f32.mxu0 0.0
    %v510 = vand.u32 %v91, 4294901760
    %511 = vmatmul.mubr.f32.gmra.mrb[0].mxu0 %v510
    %v512 = vpop.f32.mrb[0].mxu0
    %v513 = vadd.f32 %v430, %v512
    %v514 = vpop.f32.mrb[0].mxu0
    %515 = vdwg.mxu0
    %516 = vmatprep.subr.mxu0 0.0
    %v517 = vand.u32 %v71, 4294901760
    %518 = vmatpush1.msra.mxu0 %v517
    %519 = vmatprep.subr.mxu0 0.0
    %v520 = vand.u32 %v72, 4294901760
    %521 = vmatpush1.msra.mxu0 %v520
    %522 = vmatprep.subr.mxu0 0.0
    %523 = vmatpush1.msra.mxu0 0.0
    %524 = vmatprep.subr.mxu0 0.0
    %525 = vmatpush1.msra.mxu0 0.0
    %526 = vmatprep.subr.mxu0 0.0
    %527 = vmatpush1.msra.mxu0 0.0
    %528 = vmatprep.subr.mxu0 0.0
    %529 = vmatpush1.msra.mxu0 0.0
    %530 = vmatprep.subr.mxu0 0.0
    %531 = vmatpush1.msra.mxu0 0.0
    %532 = vmatprep.subr.mxu0 0.0
    %533 = vmatpush1.msra.mxu0 0.0
    %534 = vmatprep.subr.mxu0 0.0
    %535 = vmatpush1.msra.mxu0 0.0
    %536 = vmatprep.subr.mxu0 0.0
    %537 = vmatpush1.msra.mxu0 0.0
    %538 = vmatprep.subr.mxu0 0.0
    %539 = vmatpush1.msra.mxu0 0.0
    %540 = vmatprep.subr.mxu0 0.0
    %541 = vmatpush1.msra.mxu0 0.0
    %542 = vmatprep.subr.mxu0 0.0
    %543 = vmatpush1.msra.mxu0 0.0
    %544 = vmatprep.subr.mxu0 0.0
    %545 = vmatpush1.msra.mxu0 0.0
    %546 = vmatprep.subr.mxu0 0.0
    %547 = vmatpush1.msra.mxu0 0.0
    %548 = vmatprep.subr.mxu0 0.0
    %549 = vmatpush1.msra.mxu0 0.0
    %550 = vmatprep.subr.mxu0 0.0
    %551 = vmatpush1.msra.mxu0 0.0
    %552 = vmatprep.subr.mxu0 0.0
    %553 = vmatpush1.msra.mxu0 0.0
    %554 = vmatprep.subr.mxu0 0.0
    %555 = vmatpush1.msra.mxu0 0.0
    %556 = vmatprep.subr.mxu0 0.0
    %557 = vmatpush1.msra.mxu0 0.0
    %558 = vmatprep.subr.mxu0 0.0
    %559 = vmatpush1.msra.mxu0 0.0
    %560 = vmatprep.subr.mxu0 0.0
    %561 = vmatpush1.msra.mxu0 0.0
    %562 = vmatprep.subr.mxu0 0.0
    %563 = vmatpush1.msra.mxu0 0.0
    %564 = vmatprep.subr.mxu0 0.0
    %565 = vmatpush1.msra.mxu0 0.0
    %566 = vmatprep.subr.mxu0 0.0
    %567 = vmatpush1.msra.mxu0 0.0
    %568 = vmatprep.subr.mxu0 0.0
    %569 = vmatpush1.msra.mxu0 0.0
    %570 = vmatprep.subr.mxu0 0.0
    %571 = vmatpush1.msra.mxu0 0.0
    %572 = vmatprep.subr.mxu0 0.0
    %573 = vmatpush1.msra.mxu0 0.0
    %574 = vmatprep.subr.mxu0 0.0
    %575 = vmatpush1.msra.mxu0 0.0
    %576 = vmatprep.subr.mxu0 0.0
    %577 = vmatpush1.msra.mxu0 0.0
    %578 = vmatprep.subr.mxu0 0.0
    %579 = vmatpush1.msra.mxu0 0.0
    %580 = vmatprep.subr.mxu0 0.0
    %581 = vmatpush1.msra.mxu0 0.0
    %582 = vmatprep.mubr.f32.mxu0 0.0
    %v583 = vand.u32 %v88, 4294901760
    %584 = vmatmul.mubr.f32.gmra.mrb[0].mxu0 %v583
    %v585 = vpop.f32.mrb[0].mxu0
    %v586 = vadd.f32 %v507, %v585
    %v587 = vpop.f32.mrb[0].mxu0
    %588 = vmatprep.mubr.f32.mxu0 0.0
    %v589 = vand.u32 %v91, 4294901760
    %590 = vmatmul.mubr.f32.gmra.mrb[0].mxu0 %v589
    %v591 = vpop.f32.mrb[0].mxu0
    %v592 = vadd.f32 %v513, %v591
    %v593 = vpop.f32.mrb[0].mxu0
    %594 = vdwg.mxu0
    %v595 = vadd.f32 %v586, %v84
    %v596 = vtanh.pop %v595
    %vm597 = vcmask 261120
    %v599 = vsel %vm597, %v596, 0
    %601 = vmatprep.subr.mxu0 0.0
    %v602 = vand.u32 %v73, 4294901760
    %603 = vmatpush1.msra.mxu0 %v602
    %604 = vmatprep.subr.mxu0 0.0
    %v605 = vand.u32 %v74, 4294901760
    %606 = vmatpush1.msra.mxu0 %v605
    %607 = vmatprep.subr.mxu0 0.0
    %v608 = vand.u32 %v75, 4294901760
    %609 = vmatpush1.msra.mxu0 %v608
    %610 = vmatprep.subr.mxu0 0.0
    %v611 = vand.u32 %v76, 4294901760
    %612 = vmatpush1.msra.mxu0 %v611
    %613 = vmatprep.subr.mxu0 0.0
    %614 = vmatpush1.msra.mxu0 0.0
    %615 = vmatprep.subr.mxu0 0.0
    %616 = vmatpush1.msra.mxu0 0.0
    %617 = vmatprep.subr.mxu0 0.0
    %618 = vmatpush1.msra.mxu0 0.0
    %619 = vmatprep.subr.mxu0 0.0
    %620 = vmatpush1.msra.mxu0 0.0
    %621 = vmatprep.subr.mxu0 0.0
    %622 = vmatpush1.msra.mxu0 0.0
    %623 = vmatprep.subr.mxu0 0.0
    %624 = vmatpush1.msra.mxu0 0.0
    %625 = vmatprep.subr.mxu0 0.0
    %626 = vmatpush1.msra.mxu0 0.0
    %627 = vmatprep.subr.mxu0 0.0
    %628 = vmatpush1.msra.mxu0 0.0
    %629 = vmatprep.subr.mxu0 0.0
    %630 = vmatpush1.msra.mxu0 0.0
    %631 = vmatprep.subr.mxu0 0.0
    %632 = vmatpush1.msra.mxu0 0.0
    %633 = vmatprep.subr.mxu0 0.0
    %634 = vmatpush1.msra.mxu0 0.0
    %635 = vmatprep.subr.mxu0 0.0
    %636 = vmatpush1.msra.mxu0 0.0
    %637 = vmatprep.subr.mxu0 0.0
    %638 = vmatpush1.msra.mxu0 0.0
    %639 = vmatprep.subr.mxu0 0.0
    %640 = vmatpush1.msra.mxu0 0.0
    %641 = vmatprep.subr.mxu0 0.0
    %642 = vmatpush1.msra.mxu0 0.0
    %643 = vmatprep.subr.mxu0 0.0
    %644 = vmatpush1.msra.mxu0 0.0
    %645 = vmatprep.subr.mxu0 0.0
    %646 = vmatpush1.msra.mxu0 0.0
    %647 = vmatprep.subr.mxu0 0.0
    %648 = vmatpush1.msra.mxu0 0.0
    %649 = vmatprep.subr.mxu0 0.0
    %650 = vmatpush1.msra.mxu0 0.0
    %651 = vmatprep.subr.mxu0 0.0
    %652 = vmatpush1.msra.mxu0 0.0
    %653 = vmatprep.subr.mxu0 0.0
    %654 = vmatpush1.msra.mxu0 0.0
    %655 = vmatprep.subr.mxu0 0.0
    %656 = vmatpush1.msra.mxu0 0.0
    %657 = vmatprep.subr.mxu0 0.0
    %658 = vmatpush1.msra.mxu0 0.0
    %659 = vmatprep.subr.mxu0 0.0
    %660 = vmatpush1.msra.mxu0 0.0
    %661 = vmatprep.subr.mxu0 0.0
    %662 = vmatpush1.msra.mxu0 0.0
    %663 = vmatprep.subr.mxu0 0.0
    %664 = vmatpush1.msra.mxu0 0.0
    %665 = vmatprep.subr.mxu0 0.0
    %666 = vmatpush1.msra.mxu0 0.0
    %667 = vmatprep.subr.mxu0 0.0
    %668 = vmatpush1.msra.mxu0 0.0
    %669 = vmatprep.mubr.f32.mxu0 0.0
    %v670 = vand.u32 %v599, 4294901760
    %v671 = vsub.f32 %v599, %v670
    %v672 = vand.u32 %v671, 4294901760
    %v673 = vsub.f32 %v671, %v672
    %v674 = vand.u32 %v673, 4294901760
    %675 = vmatmul.mubr.f32.gmra.mrb[0].mxu0 %v674
    %v676 = vpop.f32.mrb[0].mxu0
    %v677 = vadd.f32 %v592, %v676
    %v678 = vpop.f32.mrb[0].mxu0
    %679 = vdwg.mxu0
    %680 = vmatprep.subr.mxu0 0.0
    %v681 = vand.u32 %v73, 4294901760
    %v682 = vsub.f32 %v73, %v681
    %v683 = vand.u32 %v682, 4294901760
    %v684 = vsub.f32 %v682, %v683
    %v685 = vand.u32 %v684, 4294901760
    %686 = vmatpush1.msra.mxu0 %v685
    %687 = vmatprep.subr.mxu0 0.0
    %v688 = vand.u32 %v74, 4294901760
    %v689 = vsub.f32 %v74, %v688
    %v690 = vand.u32 %v689, 4294901760
    %v691 = vsub.f32 %v689, %v690
    %v692 = vand.u32 %v691, 4294901760
    %693 = vmatpush1.msra.mxu0 %v692
    %694 = vmatprep.subr.mxu0 0.0
    %v695 = vand.u32 %v75, 4294901760
    %v696 = vsub.f32 %v75, %v695
    %v697 = vand.u32 %v696, 4294901760
    %v698 = vsub.f32 %v696, %v697
    %v699 = vand.u32 %v698, 4294901760
    %700 = vmatpush1.msra.mxu0 %v699
    %701 = vmatprep.subr.mxu0 0.0
    %v702 = vand.u32 %v76, 4294901760
    %v703 = vsub.f32 %v76, %v702
    %v704 = vand.u32 %v703, 4294901760
    %v705 = vsub.f32 %v703, %v704
    %v706 = vand.u32 %v705, 4294901760
    %707 = vmatpush1.msra.mxu0 %v706
    %708 = vmatprep.subr.mxu0 0.0
    %709 = vmatpush1.msra.mxu0 0.0
    %710 = vmatprep.subr.mxu0 0.0
    %711 = vmatpush1.msra.mxu0 0.0
    %712 = vmatprep.subr.mxu0 0.0
    %713 = vmatpush1.msra.mxu0 0.0
    %714 = vmatprep.subr.mxu0 0.0
    %715 = vmatpush1.msra.mxu0 0.0
    %716 = vmatprep.subr.mxu0 0.0
    %717 = vmatpush1.msra.mxu0 0.0
    %718 = vmatprep.subr.mxu0 0.0
    %719 = vmatpush1.msra.mxu0 0.0
    %720 = vmatprep.subr.mxu0 0.0
    %721 = vmatpush1.msra.mxu0 0.0
    %722 = vmatprep.subr.mxu0 0.0
    %723 = vmatpush1.msra.mxu0 0.0
    %724 = vmatprep.subr.mxu0 0.0
    %725 = vmatpush1.msra.mxu0 0.0
    %726 = vmatprep.subr.mxu0 0.0
    %727 = vmatpush1.msra.mxu0 0.0
    %728 = vmatprep.subr.mxu0 0.0
    %729 = vmatpush1.msra.mxu0 0.0
    %730 = vmatprep.subr.mxu0 0.0
    %731 = vmatpush1.msra.mxu0 0.0
    %732 = vmatprep.subr.mxu0 0.0
    %733 = vmatpush1.msra.mxu0 0.0
    %734 = vmatprep.subr.mxu0 0.0
    %735 = vmatpush1.msra.mxu0 0.0
    %736 = vmatprep.subr.mxu0 0.0
    %737 = vmatpush1.msra.mxu0 0.0
    %738 = vmatprep.subr.mxu0 0.0
    %739 = vmatpush1.msra.mxu0 0.0
    %740 = vmatprep.subr.mxu0 0.0
    %741 = vmatpush1.msra.mxu0 0.0
    %742 = vmatprep.subr.mxu0 0.0
    %743 = vmatpush1.msra.mxu0 0.0
    %744 = vmatprep.subr.mxu0 0.0
    %745 = vmatpush1.msra.mxu0 0.0
    %746 = vmatprep.subr.mxu0 0.0
    %747 = vmatpush1.msra.mxu0 0.0
    %748 = vmatprep.subr.mxu0 0.0
    %749 = vmatpush1.msra.mxu0 0.0
    %750 = vmatprep.subr.mxu0 0.0
    %751 = vmatpush1.msra.mxu0 0.0
    %752 = vmatprep.subr.mxu0 0.0
    %753 = vmatpush1.msra.mxu0 0.0
    %754 = vmatprep.subr.mxu0 0.0
    %755 = vmatpush1.msra.mxu0 0.0
    %756 = vmatprep.subr.mxu0 0.0
    %757 = vmatpush1.msra.mxu0 0.0
    %758 = vmatprep.subr.mxu0 0.0
    %759 = vmatpush1.msra.mxu0 0.0
    %760 = vmatprep.subr.mxu0 0.0
    %761 = vmatpush1.msra.mxu0 0.0
    %762 = vmatprep.subr.mxu0 0.0
    %763 = vmatpush1.msra.mxu0 0.0
    %764 = vmatprep.mubr.f32.mxu0 0.0
    %v765 = vand.u32 %v599, 4294901760
    %766 = vmatmul.mubr.f32.gmra.mrb[0].mxu0 %v765
    %v767 = vpop.f32.mrb[0].mxu0
    %v768 = vadd.f32 %v677, %v767
    %v769 = vpop.f32.mrb[0].mxu0
    %770 = vdwg.mxu0
    %771 = vmatprep.subr.mxu0 0.0
    %v772 = vand.u32 %v73, 4294901760
    %v773 = vsub.f32 %v73, %v772
    %774 = vmatpush1.msra.mxu0 %v773
    %775 = vmatprep.subr.mxu0 0.0
    %v776 = vand.u32 %v74, 4294901760
    %v777 = vsub.f32 %v74, %v776
    %778 = vmatpush1.msra.mxu0 %v777
    %779 = vmatprep.subr.mxu0 0.0
    %v780 = vand.u32 %v75, 4294901760
    %v781 = vsub.f32 %v75, %v780
    %782 = vmatpush1.msra.mxu0 %v781
    %783 = vmatprep.subr.mxu0 0.0
    %v784 = vand.u32 %v76, 4294901760
    %v785 = vsub.f32 %v76, %v784
    %786 = vmatpush1.msra.mxu0 %v785
    %787 = vmatprep.subr.mxu0 0.0
    %788 = vmatpush1.msra.mxu0 0.0
    %789 = vmatprep.subr.mxu0 0.0
    %790 = vmatpush1.msra.mxu0 0.0
    %791 = vmatprep.subr.mxu0 0.0
    %792 = vmatpush1.msra.mxu0 0.0
    %793 = vmatprep.subr.mxu0 0.0
    %794 = vmatpush1.msra.mxu0 0.0
    %795 = vmatprep.subr.mxu0 0.0
    %796 = vmatpush1.msra.mxu0 0.0
    %797 = vmatprep.subr.mxu0 0.0
    %798 = vmatpush1.msra.mxu0 0.0
    %799 = vmatprep.subr.mxu0 0.0
    %800 = vmatpush1.msra.mxu0 0.0
    %801 = vmatprep.subr.mxu0 0.0
    %802 = vmatpush1.msra.mxu0 0.0
    %803 = vmatprep.subr.mxu0 0.0
    %804 = vmatpush1.msra.mxu0 0.0
    %805 = vmatprep.subr.mxu0 0.0
    %806 = vmatpush1.msra.mxu0 0.0
    %807 = vmatprep.subr.mxu0 0.0
    %808 = vmatpush1.msra.mxu0 0.0
    %809 = vmatprep.subr.mxu0 0.0
    %810 = vmatpush1.msra.mxu0 0.0
    %811 = vmatprep.subr.mxu0 0.0
    %812 = vmatpush1.msra.mxu0 0.0
    %813 = vmatprep.subr.mxu0 0.0
    %814 = vmatpush1.msra.mxu0 0.0
    %815 = vmatprep.subr.mxu0 0.0
    %816 = vmatpush1.msra.mxu0 0.0
    %817 = vmatprep.subr.mxu0 0.0
    %818 = vmatpush1.msra.mxu0 0.0
    %819 = vmatprep.subr.mxu0 0.0
    %820 = vmatpush1.msra.mxu0 0.0
    %821 = vmatprep.subr.mxu0 0.0
    %822 = vmatpush1.msra.mxu0 0.0
    %823 = vmatprep.subr.mxu0 0.0
    %824 = vmatpush1.msra.mxu0 0.0
    %825 = vmatprep.subr.mxu0 0.0
    %826 = vmatpush1.msra.mxu0 0.0
    %827 = vmatprep.subr.mxu0 0.0
    %828 = vmatpush1.msra.mxu0 0.0
    %829 = vmatprep.subr.mxu0 0.0
    %830 = vmatpush1.msra.mxu0 0.0
    %831 = vmatprep.subr.mxu0 0.0
    %832 = vmatpush1.msra.mxu0 0.0
    %833 = vmatprep.subr.mxu0 0.0
    %834 = vmatpush1.msra.mxu0 0.0
    %835 = vmatprep.subr.mxu0 0.0
    %836 = vmatpush1.msra.mxu0 0.0
    %837 = vmatprep.subr.mxu0 0.0
    %838 = vmatpush1.msra.mxu0 0.0
    %839 = vmatprep.subr.mxu0 0.0
    %840 = vmatpush1.msra.mxu0 0.0
    %841 = vmatprep.subr.mxu0 0.0
    %842 = vmatpush1.msra.mxu0 0.0
    %843 = vmatprep.mubr.f32.mxu0 0.0
    %v844 = vand.u32 %v599, 4294901760
    %v845 = vsub.f32 %v599, %v844
    %846 = vmatmul.mubr.f32.gmra.mrb[0].mxu0 %v845
    %v847 = vpop.f32.mrb[0].mxu0
    %v848 = vadd.f32 %v768, %v847
    %v849 = vpop.f32.mrb[0].mxu0
    %850 = vdwg.mxu0
    %851 = vmatprep.subr.mxu0 0.0
    %v852 = vand.u32 %v73, 4294901760
    %853 = vmatpush1.msra.mxu0 %v852
    %854 = vmatprep.subr.mxu0 0.0
    %v855 = vand.u32 %v74, 4294901760
    %856 = vmatpush1.msra.mxu0 %v855
    %857 = vmatprep.subr.mxu0 0.0
    %v858 = vand.u32 %v75, 4294901760
    %859 = vmatpush1.msra.mxu0 %v858
    %860 = vmatprep.subr.mxu0 0.0
    %v861 = vand.u32 %v76, 4294901760
    %862 = vmatpush1.msra.mxu0 %v861
    %863 = vmatprep.subr.mxu0 0.0
    %864 = vmatpush1.msra.mxu0 0.0
    %865 = vmatprep.subr.mxu0 0.0
    %866 = vmatpush1.msra.mxu0 0.0
    %867 = vmatprep.subr.mxu0 0.0
    %868 = vmatpush1.msra.mxu0 0.0
    %869 = vmatprep.subr.mxu0 0.0
    %870 = vmatpush1.msra.mxu0 0.0
    %871 = vmatprep.subr.mxu0 0.0
    %872 = vmatpush1.msra.mxu0 0.0
    %873 = vmatprep.subr.mxu0 0.0
    %874 = vmatpush1.msra.mxu0 0.0
    %875 = vmatprep.subr.mxu0 0.0
    %876 = vmatpush1.msra.mxu0 0.0
    %877 = vmatprep.subr.mxu0 0.0
    %878 = vmatpush1.msra.mxu0 0.0
    %879 = vmatprep.subr.mxu0 0.0
    %880 = vmatpush1.msra.mxu0 0.0
    %881 = vmatprep.subr.mxu0 0.0
    %882 = vmatpush1.msra.mxu0 0.0
    %883 = vmatprep.subr.mxu0 0.0
    %884 = vmatpush1.msra.mxu0 0.0
    %885 = vmatprep.subr.mxu0 0.0
    %886 = vmatpush1.msra.mxu0 0.0
    %887 = vmatprep.subr.mxu0 0.0
    %888 = vmatpush1.msra.mxu0 0.0
    %889 = vmatprep.subr.mxu0 0.0
    %890 = vmatpush1.msra.mxu0 0.0
    %891 = vmatprep.subr.mxu0 0.0
    %892 = vmatpush1.msra.mxu0 0.0
    %893 = vmatprep.subr.mxu0 0.0
    %894 = vmatpush1.msra.mxu0 0.0
    %895 = vmatprep.subr.mxu0 0.0
    %896 = vmatpush1.msra.mxu0 0.0
    %897 = vmatprep.subr.mxu0 0.0
    %898 = vmatpush1.msra.mxu0 0.0
    %899 = vmatprep.subr.mxu0 0.0
    %900 = vmatpush1.msra.mxu0 0.0
    %901 = vmatprep.subr.mxu0 0.0
    %902 = vmatpush1.msra.mxu0 0.0
    %903 = vmatprep.subr.mxu0 0.0
    %904 = vmatpush1.msra.mxu0 0.0
    %905 = vmatprep.subr.mxu0 0.0
    %906 = vmatpush1.msra.mxu0 0.0
    %907 = vmatprep.subr.mxu0 0.0
    %908 = vmatpush1.msra.mxu0 0.0
    %909 = vmatprep.subr.mxu0 0.0
    %910 = vmatpush1.msra.mxu0 0.0
    %911 = vmatprep.subr.mxu0 0.0
    %912 = vmatpush1.msra.mxu0 0.0
    %913 = vmatprep.subr.mxu0 0.0
    %914 = vmatpush1.msra.mxu0 0.0
    %915 = vmatprep.subr.mxu0 0.0
    %916 = vmatpush1.msra.mxu0 0.0
    %917 = vmatprep.subr.mxu0 0.0
    %918 = vmatpush1.msra.mxu0 0.0
    %919 = vmatprep.mubr.f32.mxu0 0.0
    %v920 = vand.u32 %v599, 4294901760
    %v921 = vsub.f32 %v599, %v920
    %v922 = vand.u32 %v921, 4294901760
    %923 = vmatmul.mubr.f32.gmra.mrb[0].mxu0 %v922
    %v924 = vpop.f32.mrb[0].mxu0
    %v925 = vadd.f32 %v848, %v924
    %v926 = vpop.f32.mrb[0].mxu0
    %927 = vdwg.mxu0
    %928 = vmatprep.subr.mxu0 0.0
    %v929 = vand.u32 %v73, 4294901760
    %v930 = vsub.f32 %v73, %v929
    %v931 = vand.u32 %v930, 4294901760
    %932 = vmatpush1.msra.mxu0 %v931
    %933 = vmatprep.subr.mxu0 0.0
    %v934 = vand.u32 %v74, 4294901760
    %v935 = vsub.f32 %v74, %v934
    %v936 = vand.u32 %v935, 4294901760
    %937 = vmatpush1.msra.mxu0 %v936
    %938 = vmatprep.subr.mxu0 0.0
    %v939 = vand.u32 %v75, 4294901760
    %v940 = vsub.f32 %v75, %v939
    %v941 = vand.u32 %v940, 4294901760
    %942 = vmatpush1.msra.mxu0 %v941
    %943 = vmatprep.subr.mxu0 0.0
    %v944 = vand.u32 %v76, 4294901760
    %v945 = vsub.f32 %v76, %v944
    %v946 = vand.u32 %v945, 4294901760
    %947 = vmatpush1.msra.mxu0 %v946
    %948 = vmatprep.subr.mxu0 0.0
    %949 = vmatpush1.msra.mxu0 0.0
    %950 = vmatprep.subr.mxu0 0.0
    %951 = vmatpush1.msra.mxu0 0.0
    %952 = vmatprep.subr.mxu0 0.0
    %953 = vmatpush1.msra.mxu0 0.0
    %954 = vmatprep.subr.mxu0 0.0
    %955 = vmatpush1.msra.mxu0 0.0
    %956 = vmatprep.subr.mxu0 0.0
    %957 = vmatpush1.msra.mxu0 0.0
    %958 = vmatprep.subr.mxu0 0.0
    %959 = vmatpush1.msra.mxu0 0.0
    %960 = vmatprep.subr.mxu0 0.0
    %961 = vmatpush1.msra.mxu0 0.0
    %962 = vmatprep.subr.mxu0 0.0
    %963 = vmatpush1.msra.mxu0 0.0
    %964 = vmatprep.subr.mxu0 0.0
    %965 = vmatpush1.msra.mxu0 0.0
    %966 = vmatprep.subr.mxu0 0.0
    %967 = vmatpush1.msra.mxu0 0.0
    %968 = vmatprep.subr.mxu0 0.0
    %969 = vmatpush1.msra.mxu0 0.0
    %970 = vmatprep.subr.mxu0 0.0
    %971 = vmatpush1.msra.mxu0 0.0
    %972 = vmatprep.subr.mxu0 0.0
    %973 = vmatpush1.msra.mxu0 0.0
    %974 = vmatprep.subr.mxu0 0.0
    %975 = vmatpush1.msra.mxu0 0.0
    %976 = vmatprep.subr.mxu0 0.0
    %977 = vmatpush1.msra.mxu0 0.0
    %978 = vmatprep.subr.mxu0 0.0
    %979 = vmatpush1.msra.mxu0 0.0
    %980 = vmatprep.subr.mxu0 0.0
    %981 = vmatpush1.msra.mxu0 0.0
    %982 = vmatprep.subr.mxu0 0.0
    %983 = vmatpush1.msra.mxu0 0.0
    %984 = vmatprep.subr.mxu0 0.0
    %985 = vmatpush1.msra.mxu0 0.0
    %986 = vmatprep.subr.mxu0 0.0
    %987 = vmatpush1.msra.mxu0 0.0
    %988 = vmatprep.subr.mxu0 0.0
    %989 = vmatpush1.msra.mxu0 0.0
    %990 = vmatprep.subr.mxu0 0.0
    %991 = vmatpush1.msra.mxu0 0.0
    %992 = vmatprep.subr.mxu0 0.0
    %993 = vmatpush1.msra.mxu0 0.0
    %994 = vmatprep.subr.mxu0 0.0
    %995 = vmatpush1.msra.mxu0 0.0
    %996 = vmatprep.subr.mxu0 0.0
    %997 = vmatpush1.msra.mxu0 0.0
    %998 = vmatprep.subr.mxu0 0.0
    %999 = vmatpush1.msra.mxu0 0.0
    %1000 = vmatprep.subr.mxu0 0.0
    %1001 = vmatpush1.msra.mxu0 0.0
    %1002 = vmatprep.subr.mxu0 0.0
    %1003 = vmatpush1.msra.mxu0 0.0
    %1004 = vmatprep.mubr.f32.mxu0 0.0
    %v1005 = vand.u32 %v599, 4294901760
    %1006 = vmatmul.mubr.f32.gmra.mrb[0].mxu0 %v1005
    %v1007 = vpop.f32.mrb[0].mxu0
    %v1008 = vadd.f32 %v925, %v1007
    %v1009 = vpop.f32.mrb[0].mxu0
    %1010 = vdwg.mxu0
    %1011 = vmatprep.subr.mxu0 0.0
    %v1012 = vand.u32 %v73, 4294901760
    %1013 = vmatpush1.msra.mxu0 %v1012
    %1014 = vmatprep.subr.mxu0 0.0
    %v1015 = vand.u32 %v74, 4294901760
    %1016 = vmatpush1.msra.mxu0 %v1015
    %1017 = vmatprep.subr.mxu0 0.0
    %v1018 = vand.u32 %v75, 4294901760
    %1019 = vmatpush1.msra.mxu0 %v1018
    %1020 = vmatprep.subr.mxu0 0.0
    %v1021 = vand.u32 %v76, 4294901760
    %1022 = vmatpush1.msra.mxu0 %v1021
    %1023 = vmatprep.subr.mxu0 0.0
    %1024 = vmatpush1.msra.mxu0 0.0
    %1025 = vmatprep.subr.mxu0 0.0
    %1026 = vmatpush1.msra.mxu0 0.0
    %1027 = vmatprep.subr.mxu0 0.0
    %1028 = vmatpush1.msra.mxu0 0.0
    %1029 = vmatprep.subr.mxu0 0.0
    %1030 = vmatpush1.msra.mxu0 0.0
    %1031 = vmatprep.subr.mxu0 0.0
    %1032 = vmatpush1.msra.mxu0 0.0
    %1033 = vmatprep.subr.mxu0 0.0
    %1034 = vmatpush1.msra.mxu0 0.0
    %1035 = vmatprep.subr.mxu0 0.0
    %1036 = vmatpush1.msra.mxu0 0.0
    %1037 = vmatprep.subr.mxu0 0.0
    %1038 = vmatpush1.msra.mxu0 0.0
    %1039 = vmatprep.subr.mxu0 0.0
    %1040 = vmatpush1.msra.mxu0 0.0
    %1041 = vmatprep.subr.mxu0 0.0
    %1042 = vmatpush1.msra.mxu0 0.0
    %1043 = vmatprep.subr.mxu0 0.0
    %1044 = vmatpush1.msra.mxu0 0.0
    %1045 = vmatprep.subr.mxu0 0.0
    %1046 = vmatpush1.msra.mxu0 0.0
    %1047 = vmatprep.subr.mxu0 0.0
    %1048 = vmatpush1.msra.mxu0 0.0
    %1049 = vmatprep.subr.mxu0 0.0
    %1050 = vmatpush1.msra.mxu0 0.0
    %1051 = vmatprep.subr.mxu0 0.0
    %1052 = vmatpush1.msra.mxu0 0.0
    %1053 = vmatprep.subr.mxu0 0.0
    %1054 = vmatpush1.msra.mxu0 0.0
    %1055 = vmatprep.subr.mxu0 0.0
    %1056 = vmatpush1.msra.mxu0 0.0
    %1057 = vmatprep.subr.mxu0 0.0
    %1058 = vmatpush1.msra.mxu0 0.0
    %1059 = vmatprep.subr.mxu0 0.0
    %1060 = vmatpush1.msra.mxu0 0.0
    %1061 = vmatprep.subr.mxu0 0.0
    %1062 = vmatpush1.msra.mxu0 0.0
    %1063 = vmatprep.subr.mxu0 0.0
    %1064 = vmatpush1.msra.mxu0 0.0
    %1065 = vmatprep.subr.mxu0 0.0
    %1066 = vmatpush1.msra.mxu0 0.0
    %1067 = vmatprep.subr.mxu0 0.0
    %1068 = vmatpush1.msra.mxu0 0.0
    %1069 = vmatprep.subr.mxu0 0.0
    %1070 = vmatpush1.msra.mxu0 0.0
    %1071 = vmatprep.subr.mxu0 0.0
    %1072 = vmatpush1.msra.mxu0 0.0
    %1073 = vmatprep.subr.mxu0 0.0
    %1074 = vmatpush1.msra.mxu0 0.0
    %1075 = vmatprep.subr.mxu0 0.0
    %1076 = vmatpush1.msra.mxu0 0.0
    %1077 = vmatprep.subr.mxu0 0.0
    %1078 = vmatpush1.msra.mxu0 0.0
    %1079 = vmatprep.mubr.f32.mxu0 0.0
    %v1080 = vand.u32 %v599, 4294901760
    %1081 = vmatmul.mubr.f32.gmra.mrb[0].mxu0 %v1080
    %v1082 = vpop.f32.mrb[0].mxu0
    %v1083 = vadd.f32 %v1008, %v1082
    %v1084 = vpop.f32.mrb[0].mxu0
    %1085 = vdwg.mxu0
    %v1086 = vadd.f32 %v1083, %v84
    %v1087 = vtanh.pop %v1086
    %1088 = vst.msk [vmem:[%s5] sm:$0xff] %vm597, %v596
    %1089 = vst.msk [vmem:[%s5 + $0x8] sm:$0xff] %vm597, %v1087
    // Predicated region
    $region38: #{basic_rnn.1} parent=1 // pred_check
      _
    $region39: #{basic_rnn.1} parent=1 // pred_check_branch
      %1091 = sbr.rel (0) target = $region41
    $region40: #{basic_rnn.1} parent=1 // pred_region
      _
    $region41: #{basic_rnn.1} parent=1 // pred_fallthru
      _
    // Predicated region
    $region42: #{basic_rnn.1} parent=1 // pred_check
      _
    $region43: #{basic_rnn.1} parent=1 // pred_check_branch
      %1093 = sbr.rel (0) target = $region45
    $region44: #{basic_rnn.1} parent=1 // pred_region
      _
    $region45: #{basic_rnn.1} parent=1 // pred_fallthru
      _
    %1094 = vsyncpa [#allocation3], 1
    %1095 = vsyncpa [#allocation5], 1
    %1096 = vsyncpa [#allocation8], 1

</llo_original>
